<compile_context>
chip_gen: v6e
topology: v6e:2x2x1
jax: 0.10.0
libtpu: 0.0.40
codegen_flags: <defaults>
</compile_context>

<pallas_src>
import functools

import jax
import jax.numpy as jnp
from jax.experimental import pallas as pl
from jax.experimental.pallas import tpu as pltpu


def _highway_kernel(x_ref, w_ref, b_ref, o_ref, *, num_layers: int, dp: int):
    """One grid step: a (block_rows, Dp) slab of (packed) tokens through all layers."""
    x = x_ref[...].astype(jnp.float32)                       # (TN, Dp) f32 recurrence state
    for layer in range(num_layers):                          # small L -> static unroll is fine
        w = w_ref[layer]                                     # (Dp, 2*Dp), proj|gate fused
        y = jnp.dot(x.astype(w.dtype), w,                    # bf16 MXU operands, f32 accumulate
                    preferred_element_type=jnp.float32) + b_ref[layer]
        proj = jnp.maximum(y[:, :dp], 0.0)                   # split at Dp: 128-lane boundary
        gate = jax.nn.sigmoid(y[:, dp:])
        x = proj + gate * (x - proj)                         # == gate*x + (1-gate)*proj
    o_ref[...] = x.astype(o_ref.dtype)


def _round_up(a: int, b: int) -> int:
    return -(-a // b) * b


def _feature_plan(d: int):
    """Return (d_pad, k) with Dp = d_pad * k a multiple of 128 (lane-dense)."""
    if d % 128 == 0:
        return d, 1
    if d < 128:
        d_pad = 1 << max(0, (d - 1).bit_length())            # next power of two <= 128
        if 128 % d_pad == 0:
            return d_pad, 128 // d_pad
        return 128, 1
    return _round_up(d, 128), 1


def _row_granularity(itemsize: int) -> int:
    """Min sublane multiple for the I/O dtype: f32->8, bf16->16, int8/fp8->32."""
    return max(8, 32 // max(1, itemsize))


def _auto_block_rows(n_rows_raw: int, dp: int, itemsize: int, row_gran: int,
                     target_bytes: int = 2 << 20) -> int:
    # Target ~2 MiB per x tile (measured ~85% of HBM roofline at 512-2048-row tiles).
    target = max(row_gran, (target_bytes // max(1, dp * itemsize)) // row_gran * row_gran)
    target = min(target, 2048)
    # Keep >= 2 grid steps when there is enough work (v7x has 2 TensorCores).
    if n_rows_raw >= 2 * row_gran:
        half = _round_up(_round_up(n_rows_raw, 2) // 2, row_gran)
        target = min(target, half)
    # Never larger than needed to cover all rows in a single block (tiny inputs).
    target = min(target, _round_up(n_rows_raw, row_gran))
    return max(target, row_gran)


def _vmem_capacity_bytes() -> int:
    try:
        return int(pltpu.get_tpu_info().vmem_capacity_bytes)
    except Exception:
        return 64 << 20          # conservative: v7x per-TensorCore capacity


def highway_pallas(x, weights, biases, *, block_rows: int | None = None,
                   matmul_dtype=jnp.bfloat16):
    """Highway forward.

    x:       (..., D)
    weights: (L, 2D, D)   PyTorch nn.Linear layout (y = x @ W.T + b)
    biases:  (L, 2D)
    matmul_dtype: dtype for MXU operands (None = keep weight dtype). Accumulation and the
                  highway recurrence state are always f32.
    """
    orig_shape = x.shape
    D = orig_shape[-1]
    L = weights.shape[0]
    assert weights.shape == (L, 2 * D, D)
    assert biases.shape == (L, 2 * D)

    d_pad, k = _feature_plan(D)
    Dp = d_pad * k                                            # lane-dense, multiple of 128

    # Split fused PyTorch projection; transpose to x @ W layout.
    w_proj = jnp.transpose(weights[:, :D, :], (0, 2, 1))      # (L, D, D)
    w_gate = jnp.transpose(weights[:, D:, :], (0, 2, 1))      # (L, D, D)
    b_proj = biases[:, :D].astype(jnp.float32)                # (L, D)
    b_gate = biases[:, D:].astype(jnp.float32)

    # Zero-pad the feature dim (padded columns stay exactly zero through the recurrence:
    # proj = relu(0) = 0, x_new = 0 + gate*(0 - 0) = 0).
    if d_pad != D:
        wpad = ((0, 0), (0, d_pad - D), (0, d_pad - D))
        w_proj = jnp.pad(w_proj, wpad)
        w_gate = jnp.pad(w_gate, wpad)
        b_proj = jnp.pad(b_proj, ((0, 0), (0, d_pad - D)))
        b_gate = jnp.pad(b_gate, ((0, 0), (0, d_pad - D)))

    # Lane packing for small D: k tokens per 128-lane tile via block-diagonal weights.
    if k > 1:
        eye = jnp.eye(k, dtype=w_proj.dtype)
        w_proj = jax.vmap(lambda w: jnp.kron(eye, w))(w_proj)  # (L, Dp, Dp)
        w_gate = jax.vmap(lambda w: jnp.kron(eye, w))(w_gate)
        b_proj = jnp.tile(b_proj, (1, k))                      # (L, Dp)
        b_gate = jnp.tile(b_gate, (1, k))

    # MXU operand dtype; force bf16 if f32 weights would not fit as a resident VMEM block.
    vmem_cap = _vmem_capacity_bytes()
    w_dtype = jnp.dtype(matmul_dtype) if matmul_dtype is not None else jnp.dtype(w_proj.dtype)
    if w_dtype.itemsize > 2 and 2 * L * Dp * Dp * w_dtype.itemsize > vmem_cap // 2:
        w_dtype = jnp.dtype(jnp.bfloat16)
    # TODO(synk): add a K/N-tiled grid axis for weights that exceed ~half VMEM even in bf16.

    # Fused (Dp, 2*Dp) weight: split of the f32 result at column Dp is a 128-lane boundary.
    w_fused = jnp.concatenate([w_proj, w_gate], axis=-1).astype(w_dtype)   # (L, Dp, 2Dp)
    b_fused = jnp.concatenate([b_proj, b_gate], axis=-1)[:, None, :]       # (L, 1, 2Dp) f32

    # Flatten tokens, choose row tile, pad, lane-pack.
    x2d = x.reshape(-1, D)
    n_tokens = x2d.shape[0]
    n_rows_raw = max(1, _round_up(n_tokens, k) // k)          # packed rows needed
    itemsize = x.dtype.itemsize
    row_gran = _row_granularity(itemsize)

    if block_rows is None:
        block_rows = _auto_block_rows(n_rows_raw, Dp, itemsize, row_gran)
    assert block_rows % row_gran == 0, (
        f"block_rows must be a multiple of {row_gran} for dtype {x.dtype}")

    n_blocks = pl.cdiv(n_rows_raw, block_rows)
    n_rows = n_blocks * block_rows
    n_tokens_pad = n_rows * k
    x2d = jnp.pad(x2d, ((0, n_tokens_pad - n_tokens), (0, d_pad - D)))
    x_packed = x2d.reshape(n_rows, Dp)

    # VMEM budget: x in/out double-buffered, weights/biases single-buffered (resident),
    # biases padded to 8 sublanes, plus headroom for the in-kernel f32 temporaries.
    io_bytes = 4 * block_rows * Dp * itemsize
    w_bytes = L * Dp * (2 * Dp) * w_dtype.itemsize
    b_bytes = L * 8 * (2 * Dp) * 4
    tmp_bytes = 2 * block_rows * (3 * Dp) * 4
    footprint = io_bytes + w_bytes + b_bytes + tmp_bytes
    vmem_limit = int(min(vmem_cap - (8 << 20), max(footprint + (4 << 20), 32 << 20)))

    cost = pl.CostEstimate(
        flops=int(L * n_rows * (2 * Dp * (2 * Dp) + 6 * Dp)),
        transcendentals=int(L * n_rows * Dp),
        bytes_accessed=int(2 * n_rows * Dp * itemsize
                           + w_fused.size * w_dtype.itemsize + b_fused.size * 4),
    )

    kernel = functools.partial(_highway_kernel, num_layers=L, dp=Dp)

    out_packed = pl.pallas_call(
        kernel,
        out_shape=jax.ShapeDtypeStruct((n_rows, Dp), x.dtype),
        grid_spec=pltpu.PrefetchScalarGridSpec(
            num_scalar_prefetch=0,
            grid=(n_rows // block_rows,),
            in_specs=[
                pl.BlockSpec((block_rows, Dp), lambda i: (i, 0)),
                # Constant index_map -> resident across the grid: single-buffer.
                pl.BlockSpec((L, Dp, 2 * Dp), lambda i: (0, 0, 0),
                             pipeline_mode=pl.Buffered(1)),
                pl.BlockSpec((L, 1, 2 * Dp), lambda i: (0, 0, 0),
                             pipeline_mode=pl.Buffered(1)),
            ],
            out_specs=pl.BlockSpec((block_rows, Dp), lambda i: (i, 0)),
        ),
        compiler_params=pltpu.CompilerParams(
            dimension_semantics=("parallel",),
            vmem_limit_bytes=vmem_limit,
        ),
        cost_estimate=cost,
    )(x_packed, w_fused, b_fused)

    out = out_packed.reshape(n_tokens_pad, d_pad)[:n_tokens, :D]
    return out.reshape(orig_shape)


def init_highway_params(key, input_dim, num_layers):
    """Synthetic init matching Highway.reset_parameters(), PyTorch layout.

    weight: (L, 2D, D) xavier_normal_; bias: first D entries 0 (proj), last D 1 (gate).
    """
    std = (2.0 / (input_dim + 2 * input_dim)) ** 0.5  # xavier_normal_, gain=1
    keys = jax.random.split(key, num_layers)
    ws = [jax.random.normal(k, (2 * input_dim, input_dim), jnp.float32) * std for k in keys]
    weights = jnp.stack(ws, axis=0)                                       # (L, 2D, D)
    bias = jnp.concatenate(
        [jnp.zeros((input_dim,), jnp.float32), jnp.ones((input_dim,), jnp.float32)]
    )
    biases = jnp.tile(bias[None, :], (num_layers, 1))                     # (L, 2D)
    return weights, biases


def highway_ref(x, weights, biases):
    """Pure-JAX reference (PyTorch-layout weights) for correctness checking."""
    D = x.shape[-1]
    for l in range(weights.shape[0]):
        proj = x @ weights[l].T + biases[l]
        proj_x = jax.nn.relu(proj[..., :D])
        gate = jax.nn.sigmoid(proj[..., D:])
        x = gate * x + (1.0 - gate) * proj_x
    return x


if __name__ == "__main__":
    INPUT_DIM = 32
    NUM_LAYERS = 2
    BATCH, SEQ = 2, 8

    key = jax.random.PRNGKey(0)
    k_x, k_w = jax.random.split(key)

    x = jax.random.normal(k_x, (BATCH, SEQ, INPUT_DIM), jnp.float32)
    weights, biases = init_highway_params(k_w, INPUT_DIM, NUM_LAYERS)

    ref = highway_ref(x, weights, biases)

    # Exact path: f32 MXU operands, tight tolerance.
    out_f32 = jax.block_until_ready(
        highway_pallas(x, weights, biases, matmul_dtype=jnp.float32))
    assert out_f32.shape == x.shape and out_f32.dtype == x.dtype
    assert jnp.allclose(out_f32, ref, atol=1e-5, rtol=1e-5), "f32 path mismatch vs reference"

    # Default fast path: bf16 MXU operands, f32 accumulate / recurrence, loose tolerance.
    out_bf16 = jax.block_until_ready(highway_pallas(x, weights, biases))
    assert out_bf16.shape == x.shape and out_bf16.dtype == x.dtype
    assert jnp.allclose(out_bf16, ref, atol=3e-2, rtol=3e-2), "bf16 path drift too large"

    print("KERNEL_OK")
</pallas_src>

<mosaic_0001>
module attributes {stable_mosaic.version = 11 : i64} {
  func.func @_highway_kernel(%arg0: i32, %arg1: memref<8x128xf32, #tpu.memory_space<vmem>>, %arg2: memref<2x128x256xf32, #tpu.memory_space<vmem>>, %arg3: memref<2x1x256xf32, #tpu.memory_space<vmem>>, %arg4: memref<8x128xf32, #tpu.memory_space<vmem>>) attributes {dimension_semantics = [#tpu.dimension_semantics<parallel>], iteration_bounds = array<i64: 1>, scalar_prefetch = 0 : i64, scratch_operands = 0 : i64, tpu.core_type = #tpu.core_type<tc>, window_params = [{transform_indices = @transform_0, window_bounds = array<i64: 8, 128>}, {pipeline_mode = #tpu.pipeline_mode<synchronous>, transform_indices = @transform_1, window_bounds = array<i64: 2, 128, 256>}, {pipeline_mode = #tpu.pipeline_mode<synchronous>, transform_indices = @transform_2, window_bounds = array<i64: 2, 1, 256>}, {transform_indices = @transform_3, window_bounds = array<i64: 8, 128>}]} {
    %c0 = arith.constant 0 : index
    %c0_0 = arith.constant 0 : index
    %0 = vector.load %arg1[%c0, %c0_0] : memref<8x128xf32, #tpu.memory_space<vmem>>, vector<8x128xf32>
    %c0_1 = arith.constant 0 : index
    %c0_2 = arith.constant 0 : index
    %c0_3 = arith.constant 0 : index
    %1 = vector.load %arg2[%c0_1, %c0_2, %c0_3] : memref<2x128x256xf32, #tpu.memory_space<vmem>>, vector<1x128x256xf32>
    %2 = vector.shape_cast %1 : vector<1x128x256xf32> to vector<128x256xf32>
    %cst = arith.constant dense<0.000000e+00> : vector<8x256xf32>
    %3 = tpu.matmul %0, %2, %cst {dimension_numbers = #tpu.dot_dimension_numbers<[1], [0], [0], [1], [0, 0, 1, 1], [], []>} : vector<8x128xf32>, vector<128x256xf32>, vector<8x256xf32> -> vector<8x256xf32>
    %c0_4 = arith.constant 0 : index
    %c0_5 = arith.constant 0 : index
    %c0_6 = arith.constant 0 : index
    %4 = vector.load %arg3[%c0_4, %c0_5, %c0_6] : memref<2x1x256xf32, #tpu.memory_space<vmem>>, vector<1x1x256xf32>
    %5 = vector.shape_cast %4 : vector<1x1x256xf32> to vector<1x256xf32>
    %6 = vector.broadcast %5 : vector<1x256xf32> to vector<8x256xf32>
    %7 = arith.addf %3, %6 : vector<8x256xf32>
    %8 = vector.extract_strided_slice %7 {offsets = [0, 0], sizes = [8, 128], strides = [1, 1]} : vector<8x256xf32> to vector<8x128xf32>
    %cst_7 = arith.constant 0.000000e+00 : f32
    %9 = vector.broadcast %cst_7 : f32 to vector<8x128xf32>
    %10 = arith.maximumf %8, %9 : vector<8x128xf32>
    %11 = vector.extract_strided_slice %7 {offsets = [0, 128], sizes = [8, 128], strides = [1, 1]} : vector<8x256xf32> to vector<8x128xf32>
    %12 = arith.negf %11 : vector<8x128xf32>
    %13 = math.exp %12 : vector<8x128xf32>
    %cst_8 = arith.constant 1.000000e+00 : f32
    %14 = vector.broadcast %cst_8 : f32 to vector<8x128xf32>
    %15 = arith.addf %14, %13 : vector<8x128xf32>
    %16 = arith.divf %14, %15 : vector<8x128xf32>
    %17 = arith.subf %0, %10 : vector<8x128xf32>
    %18 = arith.mulf %16, %17 : vector<8x128xf32>
    %19 = arith.addf %10, %18 : vector<8x128xf32>
    %c1 = arith.constant 1 : index
    %c0_9 = arith.constant 0 : index
    %c0_10 = arith.constant 0 : index
    %20 = vector.load %arg2[%c1, %c0_9, %c0_10] : memref<2x128x256xf32, #tpu.memory_space<vmem>>, vector<1x128x256xf32>
    %21 = vector.shape_cast %20 : vector<1x128x256xf32> to vector<128x256xf32>
    %cst_11 = arith.constant dense<0.000000e+00> : vector<8x256xf32>
    %22 = tpu.matmul %19, %21, %cst_11 {dimension_numbers = #tpu.dot_dimension_numbers<[1], [0], [0], [1], [0, 0, 1, 1], [], []>} : vector<8x128xf32>, vector<128x256xf32>, vector<8x256xf32> -> vector<8x256xf32>
    %c1_12 = arith.constant 1 : index
    %c0_13 = arith.constant 0 : index
    %c0_14 = arith.constant 0 : index
    %23 = vector.load %arg3[%c1_12, %c0_13, %c0_14] : memref<2x1x256xf32, #tpu.memory_space<vmem>>, vector<1x1x256xf32>
    %24 = vector.shape_cast %23 : vector<1x1x256xf32> to vector<1x256xf32>
    %25 = vector.broadcast %24 : vector<1x256xf32> to vector<8x256xf32>
    %26 = arith.addf %22, %25 : vector<8x256xf32>
    %27 = vector.extract_strided_slice %26 {offsets = [0, 0], sizes = [8, 128], strides = [1, 1]} : vector<8x256xf32> to vector<8x128xf32>
    %cst_15 = arith.constant 0.000000e+00 : f32
    %28 = vector.broadcast %cst_15 : f32 to vector<8x128xf32>
    %29 = arith.maximumf %27, %28 : vector<8x128xf32>
    %30 = vector.extract_strided_slice %26 {offsets = [0, 128], sizes = [8, 128], strides = [1, 1]} : vector<8x256xf32> to vector<8x128xf32>
    %31 = arith.negf %30 : vector<8x128xf32>
    %32 = math.exp %31 : vector<8x128xf32>
    %cst_16 = arith.constant 1.000000e+00 : f32
    %33 = vector.broadcast %cst_16 : f32 to vector<8x128xf32>
    %34 = arith.addf %33, %32 : vector<8x128xf32>
    %35 = arith.divf %33, %34 : vector<8x128xf32>
    %36 = arith.subf %19, %29 : vector<8x128xf32>
    %37 = arith.mulf %35, %36 : vector<8x128xf32>
    %38 = arith.addf %29, %37 : vector<8x128xf32>
    %c0_17 = arith.constant 0 : index
    %c0_18 = arith.constant 0 : index
    %39 = vector.load %arg4[%c0_17, %c0_18] : memref<8x128xf32, #tpu.memory_space<vmem>>, vector<8x128xf32>
    tpu.vector_store %arg4[%c0_17, %c0_18], %38 {strides = array<i32>} : memref<8x128xf32, #tpu.memory_space<vmem>>, vector<8x128xf32>,
    return
  }
  func.func @transform_0(%arg0: i32) -> (i32, i32) {
    %c0_i32 = arith.constant 0 : i32
    %c0_i32_0 = arith.constant 0 : i32
    return %arg0, %c0_i32 : i32, i32
  }
  func.func @transform_1(%arg0: i32) -> (i32, i32, i32) {
    %c0_i32 = arith.constant 0 : i32
    %c0_i32_0 = arith.constant 0 : i32
    %c0_i32_1 = arith.constant 0 : i32
    %c0_i32_2 = arith.constant 0 : i32
    return %c0_i32, %c0_i32_0, %c0_i32_1 : i32, i32, i32
  }
  func.func @transform_2(%arg0: i32) -> (i32, i32, i32) {
    %c0_i32 = arith.constant 0 : i32
    %c0_i32_0 = arith.constant 0 : i32
    %c0_i32_1 = arith.constant 0 : i32
    %c0_i32_2 = arith.constant 0 : i32
    return %c0_i32, %c0_i32_0, %c0_i32_1 : i32, i32, i32
  }
  func.func @transform_3(%arg0: i32) -> (i32, i32) {
    %c0_i32 = arith.constant 0 : i32
    %c0_i32_0 = arith.constant 0 : i32
    return %arg0, %c0_i32 : i32, i32
  }
}

</mosaic_0001>

<llo_original>
// kernel: tpu_custom_call.1
$region0: #{tpu_custom_call.1}
  #allocation0 [shape = 'u32[]', space=smem, size = 0x4, offset = 0x4, fixed_abs, tag = 'smem constant byte address 0x4 - core index']
  #allocation1 [shape = 'u32[144,128]{1,0:T(1,128)}', space=vmem, size = 0x12000, scoped, tag = 'internal scratch']
  %s0 = inlined_call_operand.hbm [shape: f32[8,128], index: 0, kind: input, shape index: {}]
  %s1 = inlined_call_operand.hbm [shape: f32[2,128,256], index: 1, kind: input, shape index: {}]
  %s2 = inlined_call_operand.hbm [shape: f32[2,1,256], index: 2, kind: input, shape index: {}]
  %s3 = inlined_call_operand.hbm [shape: f32[8,128], index: 3, kind: output, shape index: {}]
  %s4 = sld [smem:[#allocation0]]
  $region34: #{tpu_custom_call.1} parent=0
    _
  %s6 = ssub.s32 1, %s4
  %s7 = scalar_select 0, %s6, %s4
  $region1: #{tpu_custom_call.1} parent=0
    #allocation2 [shape = 'u8[4096]{0}', space=vmem, size = 0x1000, scoped, tag = 'input window, operand 0, single buffered']
    #allocation3 [shape = 's32[1]{0}', space=sflag, size = 0x4, scoped, tag = 'scoped memory for tpu_custom_call.1']
    #allocation4 [shape = 's32[1]{0}', space=sflag, size = 0x4, scoped, tag = 'scoped memory for tpu_custom_call.1']
    #allocation5 [shape = 'u8[262144]{0}', space=vmem, size = 0x40000, scoped, tag = 'input window, operand 1, single buffered']
    #allocation6 [shape = 's32[1]{0}', space=sflag, size = 0x4, scoped, tag = 'scoped memory for tpu_custom_call.1']
    #allocation7 [shape = 'u8[2048]{0}', space=vmem, size = 0x800, scoped, tag = 'input window, operand 2, single buffered']
    #allocation8 [shape = 'u8[4096]{0}', space=vmem, size = 0x1000, scoped, tag = 'output window, operand 0, single buffered']
    %8 = vsyncpa [#allocation3], 0
    %9 = vsyncpa [#allocation6], 0
    %10 = vsyncpa [#allocation4], 0
    // Predicated region
    $region2: #{tpu_custom_call.1} parent=1 // pred_check
      _
    $region3: #{tpu_custom_call.1} parent=1 // pred_check_branch
      %12 = sbr.rel (0) target = $region5
    $region4: #{tpu_custom_call.1} parent=1 // pred_region
      %s14 = ssub.s32 128, 128
      %15 = vsyncadd [#allocation3], %s14
      %s17 = sshll.u32 [#allocation2], 4
      %s18 = int_to_ptr.vmem [resolvable:$true] %s17
      %20 = dma.hbm_to_vmem [thread:$0]  %s0, 128, %s18, [#allocation3]
    $region5: #{tpu_custom_call.1} parent=1 // pred_fallthru
      _
    // Predicated region
    $region6: #{tpu_custom_call.1} parent=1 // pred_check
      _
    $region7: #{tpu_custom_call.1} parent=1 // pred_check_branch
      %22 = sbr.rel (0) target = $region9
    $region8: #{tpu_custom_call.1} parent=1 // pred_region
      %s24 = ssub.s32 8192, 8192
      %25 = vsyncadd [#allocation6], %s24
      %s26 = sshll.u32 [#allocation5], 4
      %s27 = int_to_ptr.vmem [resolvable:$true] %s26
      %32 = dma.hbm_to_vmem [thread:$0]  %s1, 8192, %s27, [#allocation6], 256, 256, 16
    $region9: #{tpu_custom_call.1} parent=1 // pred_fallthru
      _
    // Predicated region
    $region10: #{tpu_custom_call.1} parent=1 // pred_check
      _
    $region11: #{tpu_custom_call.1} parent=1 // pred_check_branch
      %34 = sbr.rel (0) target = $region13
    $region12: #{tpu_custom_call.1} parent=1 // pred_region
      %s36 = ssub.s32 64, 64
      %37 = vsyncadd [#allocation6], %s36
      %s38 = sshll.u32 [#allocation7], 4
      %s39 = int_to_ptr.vmem [resolvable:$true] %s38
      %44 = dma.hbm_to_vmem [thread:$0]  %s2, 64, %s39, [#allocation6], 32, 32, 2
    $region13: #{tpu_custom_call.1} parent=1 // pred_fallthru
      _
    // Predicated region
    $region14: #{tpu_custom_call.1} parent=1 // pred_check
      _
    $region15: #{tpu_custom_call.1} parent=1 // pred_check_branch
      %46 = sbr.rel (0) target = $region17
    $region16: #{tpu_custom_call.1} parent=1 // pred_region
      %47 = dma.done [#allocation3], 128
    $region17: #{tpu_custom_call.1} parent=1 // pred_fallthru
      _
    // Predicated region
    $region18: #{tpu_custom_call.1} parent=1 // pred_check
      _
    $region19: #{tpu_custom_call.1} parent=1 // pred_check_branch
      %49 = sbr.rel (0) target = $region21
    $region20: #{tpu_custom_call.1} parent=1 // pred_region
      %50 = dma.done [#allocation6], 8192
    $region21: #{tpu_custom_call.1} parent=1 // pred_fallthru
      _
    // Predicated region
    $region22: #{tpu_custom_call.1} parent=1 // pred_check
      _
    $region23: #{tpu_custom_call.1} parent=1 // pred_check_branch
      %52 = sbr.rel (0) target = $region25
    $region24: #{tpu_custom_call.1} parent=1 // pred_region
      %53 = dma.done [#allocation6], 64
    $region25: #{tpu_custom_call.1} parent=1 // pred_fallthru
      _
    %v54 = vld [vmem:[#allocation2] sm:$0xff]
    %v55 = vld [vmem:[#allocation5] sm:$0xff]
    %v56 = vld [vmem:[#allocation5 + $0x8] sm:$0xff]
    %v57 = vld [vmem:[#allocation5 + $0x10] sm:$0xff]
    %v58 = vld [vmem:[#allocation5 + $0x18] sm:$0xff]
    %v59 = vld [vmem:[#allocation5 + $0x20] sm:$0xff]
    %v60 = vld [vmem:[#allocation5 + $0x28] sm:$0xff]
    %v61 = vld [vmem:[#allocation5 + $0x30] sm:$0xff]
    %v62 = vld [vmem:[#allocation5 + $0x38] sm:$0xff]
    %v63 = vld [vmem:[#allocation5 + $0x40] sm:$0xff]
    %v64 = vld [vmem:[#allocation5 + $0x48] sm:$0xff]
    %v65 = vld [vmem:[#allocation5 + $0x50] sm:$0xff]
    %v66 = vld [vmem:[#allocation5 + $0x58] sm:$0xff]
    %v67 = vld [vmem:[#allocation5 + $0x60] sm:$0xff]
    %v68 = vld [vmem:[#allocation5 + $0x68] sm:$0xff]
    %v69 = vld [vmem:[#allocation5 + $0x70] sm:$0xff]
    %v70 = vld [vmem:[#allocation5 + $0x78] sm:$0xff]
    %v71 = vld [vmem:[#allocation5 + $0x80] sm:$0xff]
    %v72 = vld [vmem:[#allocation5 + $0x88] sm:$0xff]
    %v73 = vld [vmem:[#allocation5 + $0x90] sm:$0xff]
    %v74 = vld [vmem:[#allocation5 + $0x98] sm:$0xff]
    %v75 = vld [vmem:[#allocation5 + $0xa0] sm:$0xff]
    %v76 = vld [vmem:[#allocation5 + $0xa8] sm:$0xff]
    %v77 = vld [vmem:[#allocation5 + $0xb0] sm:$0xff]
    %v78 = vld [vmem:[#allocation5 + $0xb8] sm:$0xff]
    %v79 = vld [vmem:[#allocation5 + $0xc0] sm:$0xff]
    %v80 = vld [vmem:[#allocation5 + $0xc8] sm:$0xff]
    %v81 = vld [vmem:[#allocation5 + $0xd0] sm:$0xff]
    %v82 = vld [vmem:[#allocation5 + $0xd8] sm:$0xff]
    %v83 = vld [vmem:[#allocation5 + $0xe0] sm:$0xff]
    %v84 = vld [vmem:[#allocation5 + $0xe8] sm:$0xff]
    %v85 = vld [vmem:[#allocation5 + $0xf0] sm:$0xff]
    %v86 = vld [vmem:[#allocation5 + $0xf8] sm:$0xff]
    %v87 = vld [vmem:[#allocation7] sm:$0x3]
    %v89 = vlaneseq
    %v90 = vshrl.u32 %v89, 7
    %v91 = vsub.s32 0, %v90
    %v92 = vrot.slane %v87, %v91
    %v93 = vlaneseq
    %v94 = vshrl.u32 %v93, 7
    %v95 = vsub.s32 1, %v94
    %v96 = vrot.slane %v87, %v95
    %99 = vmatprep.subr.mxu0 %v86
    %100 = vmatpush1.msra.mxu0 %v85
    %101 = vmatprep.subr.mxu0 %v84
    %102 = vmatpush1.msra.mxu0 %v83
    %103 = vmatprep.subr.mxu0 %v82
    %104 = vmatpush1.msra.mxu0 %v81
    %105 = vmatprep.subr.mxu0 %v80
    %106 = vmatpush1.msra.mxu0 %v79
    %107 = vmatprep.subr.mxu0 %v78
    %108 = vmatpush1.msra.mxu0 %v77
    %109 = vmatprep.subr.mxu0 %v76
    %110 = vmatpush1.msra.mxu0 %v75
    %111 = vmatprep.subr.mxu0 %v74
    %112 = vmatpush1.msra.mxu0 %v73
    %113 = vmatprep.subr.mxu0 %v72
    %114 = vmatpush1.msra.mxu0 %v71
    %115 = vmatprep.subr.mxu0 %v70
    %116 = vmatpush1.msra.mxu0 %v69
    %117 = vmatprep.subr.mxu0 %v68
    %118 = vmatpush1.msra.mxu0 %v67
    %119 = vmatprep.subr.mxu0 %v66
    %120 = vmatpush1.msra.mxu0 %v65
    %121 = vmatprep.subr.mxu0 %v64
    %122 = vmatpush1.msra.mxu0 %v63
    %123 = vmatprep.subr.mxu0 %v62
    %124 = vmatpush1.msra.mxu0 %v61
    %125 = vmatprep.subr.mxu0 %v60
    %126 = vmatpush1.msra.mxu0 %v59
    %127 = vmatprep.subr.mxu0 %v58
    %128 = vmatpush1.msra.mxu0 %v57
    %129 = vmatprep.subr.mxu0 %v56
    %130 = vmatpush1.msra.mxu0 %v55
    %131 = vmatprep.subr.mxu0 0.0
    %132 = vmatpush2.msra.mxu0 0.0
    %133 = vmatprep.subr.mxu0 0.0
    %134 = vmatpush2.msra.mxu0 0.0
    %135 = vmatprep.subr.mxu0 0.0
    %136 = vmatpush2.msra.mxu0 0.0
    %137 = vmatprep.subr.mxu0 0.0
    %138 = vmatpush2.msra.mxu0 0.0
    %139 = vmatprep.subr.mxu0 0.0
    %140 = vmatpush2.msra.mxu0 0.0
    %141 = vmatprep.subr.mxu0 0.0
    %142 = vmatpush2.msra.mxu0 0.0
    %143 = vmatprep.subr.mxu0 0.0
    %144 = vmatpush2.msra.mxu0 0.0
    %145 = vmatprep.subr.mxu0 0.0
    %146 = vmatpush2.msra.mxu0 0.0
    %147 = vmatprep.subr.mxu0 0.0
    %148 = vmatpush2.msra.mxu0 0.0
    %149 = vmatprep.subr.mxu0 0.0
    %150 = vmatpush2.msra.mxu0 0.0
    %151 = vmatprep.subr.mxu0 0.0
    %152 = vmatpush2.msra.mxu0 0.0
    %153 = vmatprep.subr.mxu0 0.0
    %154 = vmatpush2.msra.mxu0 0.0
    %155 = vmatprep.subr.mxu0 0.0
    %156 = vmatpush2.msra.mxu0 0.0
    %157 = vmatprep.subr.mxu0 0.0
    %158 = vmatpush2.msra.mxu0 0.0
    %159 = vmatprep.subr.mxu0 0.0
    %160 = vmatpush2.msra.mxu0 0.0
    %161 = vmatprep.subr.mxu0 0.0
    %162 = vmatpush2.msra.mxu0 0.0
    %163 = vmatprep.mubr.f32.mxu0 0.0
    %164 = vmatmul.mubr.f32.gmra.mxu0 %v54
    %v165 = vpop.f32.mrf.mxu0
    %v166 = vadd.f32 %v92, %v165
    %v167 = vpop.f32.mrf.mxu0
    %v168 = vadd.f32 %v96, %v167
    %169 = vdwg.mxu0
    %v170 = vmax.f32 %v166, 0.0
    %v171 = vxor.u32 %v168, 2147483648
    %v172 = vmul.f32 %v171, 1.442695
    %v173 = vpow.pop %v172
    %v174 = vadd.f32 %v173, 1.0
    %v175 = vrcp.pop %v174
    %v176 = vmul.f32 1.0, %v175
    %v177 = vsub.f32 %v54, %v170
    %v178 = vmul.f32 %v176, %v177
    %v179 = vadd.f32 %v170, %v178
    %s180 = scalar_lea.vmem [#allocation5], 256
    %v181 = vld [vmem:[%s180] sm:$0xff]
    %v182 = vld [vmem:[%s180 + $0x8] sm:$0xff]
    %v183 = vld [vmem:[%s180 + $0x10] sm:$0xff]
    %v184 = vld [vmem:[%s180 + $0x18] sm:$0xff]
    %v185 = vld [vmem:[%s180 + $0x20] sm:$0xff]
    %v186 = vld [vmem:[%s180 + $0x28] sm:$0xff]
    %v187 = vld [vmem:[%s180 + $0x30] sm:$0xff]
    %v188 = vld [vmem:[%s180 + $0x38] sm:$0xff]
    %v189 = vld [vmem:[%s180 + $0x40] sm:$0xff]
    %v190 = vld [vmem:[%s180 + $0x48] sm:$0xff]
    %v191 = vld [vmem:[%s180 + $0x50] sm:$0xff]
    %v192 = vld [vmem:[%s180 + $0x58] sm:$0xff]
    %v193 = vld [vmem:[%s180 + $0x60] sm:$0xff]
    %v194 = vld [vmem:[%s180 + $0x68] sm:$0xff]
    %v195 = vld [vmem:[%s180 + $0x70] sm:$0xff]
    %v196 = vld [vmem:[%s180 + $0x78] sm:$0xff]
    %v197 = vld [vmem:[%s180 + $0x80] sm:$0xff]
    %v198 = vld [vmem:[%s180 + $0x88] sm:$0xff]
    %v199 = vld [vmem:[%s180 + $0x90] sm:$0xff]
    %v200 = vld [vmem:[%s180 + $0x98] sm:$0xff]
    %v201 = vld [vmem:[%s180 + $0xa0] sm:$0xff]
    %v202 = vld [vmem:[%s180 + $0xa8] sm:$0xff]
    %v203 = vld [vmem:[%s180 + $0xb0] sm:$0xff]
    %v204 = vld [vmem:[%s180 + $0xb8] sm:$0xff]
    %v205 = vld [vmem:[%s180 + $0xc0] sm:$0xff]
    %v206 = vld [vmem:[%s180 + $0xc8] sm:$0xff]
    %v207 = vld [vmem:[%s180 + $0xd0] sm:$0xff]
    %v208 = vld [vmem:[%s180 + $0xd8] sm:$0xff]
    %v209 = vld [vmem:[%s180 + $0xe0] sm:$0xff]
    %v210 = vld [vmem:[%s180 + $0xe8] sm:$0xff]
    %v211 = vld [vmem:[%s180 + $0xf0] sm:$0xff]
    %v212 = vld [vmem:[%s180 + $0xf8] sm:$0xff]
    %s213 = scalar_lea.vmem [#allocation7], 2
    %v214 = vld [vmem:[%s213] sm:$0x3]
    %v216 = vlaneseq
    %v217 = vshrl.u32 %v216, 7
    %v218 = vsub.s32 0, %v217
    %v219 = vrot.slane %v214, %v218
    %v220 = vlaneseq
    %v221 = vshrl.u32 %v220, 7
    %v222 = vsub.s32 1, %v221
    %v223 = vrot.slane %v214, %v222
    %226 = vmatprep.subr.mxu0 %v212
    %227 = vmatpush1.msra.mxu0 %v211
    %228 = vmatprep.subr.mxu0 %v210
    %229 = vmatpush1.msra.mxu0 %v209
    %230 = vmatprep.subr.mxu0 %v208
    %231 = vmatpush1.msra.mxu0 %v207
    %232 = vmatprep.subr.mxu0 %v206
    %233 = vmatpush1.msra.mxu0 %v205
    %234 = vmatprep.subr.mxu0 %v204
    %235 = vmatpush1.msra.mxu0 %v203
    %236 = vmatprep.subr.mxu0 %v202
    %237 = vmatpush1.msra.mxu0 %v201
    %238 = vmatprep.subr.mxu0 %v200
    %239 = vmatpush1.msra.mxu0 %v199
    %240 = vmatprep.subr.mxu0 %v198
    %241 = vmatpush1.msra.mxu0 %v197
    %242 = vmatprep.subr.mxu0 %v196
    %243 = vmatpush1.msra.mxu0 %v195
    %244 = vmatprep.subr.mxu0 %v194
    %245 = vmatpush1.msra.mxu0 %v193
    %246 = vmatprep.subr.mxu0 %v192
    %247 = vmatpush1.msra.mxu0 %v191
    %248 = vmatprep.subr.mxu0 %v190
    %249 = vmatpush1.msra.mxu0 %v189
    %250 = vmatprep.subr.mxu0 %v188
    %251 = vmatpush1.msra.mxu0 %v187
    %252 = vmatprep.subr.mxu0 %v186
    %253 = vmatpush1.msra.mxu0 %v185
    %254 = vmatprep.subr.mxu0 %v184
    %255 = vmatpush1.msra.mxu0 %v183
    %256 = vmatprep.subr.mxu0 %v182
    %257 = vmatpush1.msra.mxu0 %v181
    %258 = vmatprep.subr.mxu0 0.0
    %259 = vmatpush2.msra.mxu0 0.0
    %260 = vmatprep.subr.mxu0 0.0
    %261 = vmatpush2.msra.mxu0 0.0
    %262 = vmatprep.subr.mxu0 0.0
    %263 = vmatpush2.msra.mxu0 0.0
    %264 = vmatprep.subr.mxu0 0.0
    %265 = vmatpush2.msra.mxu0 0.0
    %266 = vmatprep.subr.mxu0 0.0
    %267 = vmatpush2.msra.mxu0 0.0
    %268 = vmatprep.subr.mxu0 0.0
    %269 = vmatpush2.msra.mxu0 0.0
    %270 = vmatprep.subr.mxu0 0.0
    %271 = vmatpush2.msra.mxu0 0.0
    %272 = vmatprep.subr.mxu0 0.0
    %273 = vmatpush2.msra.mxu0 0.0
    %274 = vmatprep.subr.mxu0 0.0
    %275 = vmatpush2.msra.mxu0 0.0
    %276 = vmatprep.subr.mxu0 0.0
    %277 = vmatpush2.msra.mxu0 0.0
    %278 = vmatprep.subr.mxu0 0.0
    %279 = vmatpush2.msra.mxu0 0.0
    %280 = vmatprep.subr.mxu0 0.0
    %281 = vmatpush2.msra.mxu0 0.0
    %282 = vmatprep.subr.mxu0 0.0
    %283 = vmatpush2.msra.mxu0 0.0
    %284 = vmatprep.subr.mxu0 0.0
    %285 = vmatpush2.msra.mxu0 0.0
    %286 = vmatprep.subr.mxu0 0.0
    %287 = vmatpush2.msra.mxu0 0.0
    %288 = vmatprep.subr.mxu0 0.0
    %289 = vmatpush2.msra.mxu0 0.0
    %290 = vmatprep.mubr.f32.mxu0 0.0
    %291 = vmatmul.mubr.f32.gmra.mxu0 %v179
    %v292 = vpop.f32.mrf.mxu0
    %v293 = vadd.f32 %v219, %v292
    %v294 = vpop.f32.mrf.mxu0
    %v295 = vadd.f32 %v223, %v294
    %296 = vdwg.mxu0
    %v297 = vmax.f32 %v293, 0.0
    %v298 = vxor.u32 %v295, 2147483648
    %v299 = vmul.f32 %v298, 1.442695
    %v300 = vpow.pop %v299
    %v301 = vadd.f32 %v300, 1.0
    %v302 = vrcp.pop %v301
    %v303 = vmul.f32 1.0, %v302
    %v304 = vsub.f32 %v179, %v297
    %v305 = vmul.f32 %v303, %v304
    %v306 = vadd.f32 %v297, %v305
    %307 = vst [vmem:[#allocation8] sm:$0xff] %v306
    // Predicated region
    $region26: #{tpu_custom_call.1} parent=1 // pred_check
      _
    $region27: #{tpu_custom_call.1} parent=1 // pred_check_branch
      %309 = sbr.rel (0) target = $region29
    $region28: #{tpu_custom_call.1} parent=1 // pred_region
      %s311 = ssub.s32 128, 128
      %312 = vsyncadd [#allocation4], %s311
      %s314 = sshll.u32 [#allocation8], 4
      %s315 = int_to_ptr.vmem [resolvable:$true] %s314
      %317 = dma.vmem_to_hbm [thread:$0]  %s315, 128, %s3, [#allocation4]
    $region29: #{tpu_custom_call.1} parent=1 // pred_fallthru
      _
    // Predicated region
    $region30: #{tpu_custom_call.1} parent=1 // pred_check
      _
    $region31: #{tpu_custom_call.1} parent=1 // pred_check_branch
      %319 = sbr.rel (0) target = $region33
    $region32: #{tpu_custom_call.1} parent=1 // pred_region
      %320 = dma.done [#allocation4], 128
    $region33: #{tpu_custom_call.1} parent=1 // pred_fallthru
      _
    %321 = vsyncpa [#allocation3], 1
    %322 = vsyncpa [#allocation6], 1
    %323 = vsyncpa [#allocation4], 1

</llo_original>
